<compile_context>
chip_gen: v7x
topology: tpu7x:2x2x1
jax: 0.10.0
libtpu: 0.0.40
codegen_flags: <defaults>
</compile_context>

<pallas_src>
import math
from functools import partial

import jax
import jax.numpy as jnp
from jax.experimental import pallas as pl
from jax.experimental.pallas import tpu as pltpu


def _mha_kernel(x_ref, wqkv_ref, bqkv_ref, wo_ref, bo_ref, o_ref,
                *, n_heads, d_k, inv_scale):
    bt, S, D = x_ref.shape
    x = x_ref[...].reshape(bt * S, D).astype(jnp.bfloat16)

    # ---- Fused Q/K/V projection: one MXU matmul, N = 3*D, bf16 -> f32 acc. --
    qkv = jnp.dot(x, wqkv_ref[...],
                  preferred_element_type=jnp.float32) + bqkv_ref[...]

    # Scale Q before QK^T: touches S*D elements instead of H*S*S scores.
    q = (qkv[:, :D] * inv_scale).astype(jnp.bfloat16)
    k = qkv[:, D:2 * D].astype(jnp.bfloat16)
    v = qkv[:, 2 * D:].astype(jnp.bfloat16)

    # ---- Head-batched layout (bt*H, S, d_k). ---------------------------------
    # Static stack of contiguous lane slices: d_k stays on the lane axis, no
    # middle-axis transpose / relayout.  (Production d_k should be 128 or a
    # multiple of 128 for full MXU contraction depth.)
    def to_heads(t):
        return jnp.stack(
            [t[b * S:(b + 1) * S, h * d_k:(h + 1) * d_k]
             for b in range(bt) for h in range(n_heads)], axis=0)

    qh, kh, vh = to_heads(q), to_heads(k), to_heads(v)

    # scores[n, q, k] = <Q_nq, K_nk>  (Q already scaled), f32 accumulation.
    s = jnp.einsum('nqd,nkd->nqk', qh, kh,
                   preferred_element_type=jnp.float32)           # (bt*H, S, S)

    # Numerically-stable softmax in f32; exact reciprocal on (N, S, 1) sums.
    m = jnp.max(s, axis=-1, keepdims=True)
    p = jnp.exp(s - m)
    l = jnp.sum(p, axis=-1, keepdims=True)
    attn = p * (1.0 / l)

    # context per head, bf16 operands, f32 accumulation.
    ctx_h = jnp.einsum('nqk,nkd->nqd', attn.astype(jnp.bfloat16), vh,
                       preferred_element_type=jnp.float32)       # (bt*H, S, d_k)

    # Back to (bt*S, D): static lane concat of per-head results.
    ctx = jnp.concatenate(
        [jnp.concatenate([ctx_h[b * n_heads + h] for h in range(n_heads)],
                         axis=-1)
         for b in range(bt)], axis=0).astype(jnp.bfloat16)        # (bt*S, D)

    # ---- Output projection. ---------------------------------------------------
    out = jnp.dot(ctx, wo_ref[...],
                  preferred_element_type=jnp.float32) + bo_ref[...]
    o_ref[...] = out.reshape(bt, S, D).astype(o_ref.dtype)


def fuse_mha_params(params):
    """One-time (init-path) weight fusion + bf16 cast -- keep OUT of forward."""
    return {
        'wqkv': jnp.concatenate([params['wq'], params['wk'], params['wv']],
                                axis=1).astype(jnp.bfloat16),
        'bqkv': jnp.concatenate([params['bq'], params['bk'], params['bv']],
                                axis=1).astype(jnp.float32),
        'wo': params['wo'].astype(jnp.bfloat16),
        'bo': params['bo'].astype(jnp.float32),
    }


def multi_head_attention(x, fused, n_heads, *, block_batch=1):
    """x: (B, S, D) float32.  fused: output of fuse_mha_params()."""
    B, S, D = x.shape
    assert D % n_heads == 0
    d_k = D // n_heads
    inv_scale = 1.0 / math.sqrt(d_k)

    bt = min(block_batch, B)
    assert B % bt == 0, "block_batch must divide the batch size"

    kernel = partial(_mha_kernel, n_heads=n_heads, d_k=d_k, inv_scale=inv_scale)

    x_spec = pl.BlockSpec((bt, S, D), lambda b: (b, 0, 0))
    # Constant index_map: the tiny bf16 weights sit in the same VMEM block for
    # every grid step (no per-step re-DMA) and impose no sequential-grid
    # requirement, so the batch axis can be "parallel" (v7x megacore).
    wqkv_spec = pl.BlockSpec((D, 3 * D), lambda b: (0, 0))
    bqkv_spec = pl.BlockSpec((1, 3 * D), lambda b: (0, 0))
    wo_spec = pl.BlockSpec((D, D), lambda b: (0, 0))
    bo_spec = pl.BlockSpec((1, D), lambda b: (0, 0))

    # NOTE: demo d_model=32 leaves the output last dim < 128 (masked stores);
    # production d_model should be a multiple of 128 for lane-dense stores.
    return pl.pallas_call(
        kernel,
        out_shape=jax.ShapeDtypeStruct((B, S, D), x.dtype),
        grid_spec=pltpu.PrefetchScalarGridSpec(
            num_scalar_prefetch=0,
            grid=(B // bt,),
            in_specs=[x_spec, wqkv_spec, bqkv_spec, wo_spec, bo_spec],
            out_specs=x_spec),
        compiler_params=pltpu.CompilerParams(
            dimension_semantics=("parallel",)),
    )(x, fused['wqkv'], fused['bqkv'], fused['wo'], fused['bo'])


def _reference_mha(x, params, n_heads):
    """Plain-JAX f32 reference mirroring the PyTorch forward (eval, mask=None)."""
    B, S, D = x.shape
    d_k = D // n_heads
    scale = math.sqrt(d_k)

    def proj(w, b):
        return x @ w + b[0]

    def split(t):  # (B,S,D) -> (B,H,S,d_k)
        return t.reshape(B, S, n_heads, d_k).transpose(0, 2, 1, 3)

    Q = split(proj(params['wq'], params['bq']))
    K = split(proj(params['wk'], params['bk']))
    V = split(proj(params['wv'], params['bv']))
    scores = jnp.einsum('bhqd,bhkd->bhqk', Q, K) / scale
    attn = jax.nn.softmax(scores, axis=-1)
    ctx = jnp.einsum('bhqk,bhkd->bhqd', attn, V)
    ctx = ctx.transpose(0, 2, 1, 3).reshape(B, S, D)
    return ctx @ params['wo'] + params['bo'][0]


if __name__ == "__main__":
    B, S, D, H = 2, 8, 32, 4

    key = jax.random.PRNGKey(0)
    keys = jax.random.split(key, 9)
    init = lambda k, shape: jax.random.normal(k, shape, jnp.float32) * 0.05

    params = {
        'wq': init(keys[0], (D, D)), 'bq': init(keys[1], (1, D)),
        'wk': init(keys[2], (D, D)), 'bk': init(keys[3], (1, D)),
        'wv': init(keys[4], (D, D)), 'bv': init(keys[5], (1, D)),
        'wo': init(keys[6], (D, D)), 'bo': init(keys[7], (1, D)),
    }
    x = jax.random.normal(keys[8], (B, S, D), jnp.float32)

    fused = fuse_mha_params(params)          # one-time init-path fusion
    out = multi_head_attention(x, fused, n_heads=H)
    out = jax.block_until_ready(out)

    ref = _reference_mha(x, params, n_heads=H)
    assert out.shape == (B, S, D)
    # Tolerance is set by bf16 MXU operands (f32 accumulation, f32 softmax).
    err = float(jnp.max(jnp.abs(out - ref)))
    assert jnp.allclose(out, ref, atol=5e-3, rtol=5e-2), err

    print("KERNEL_OK")
</pallas_src>

<mosaic_0001>
module attributes {stable_mosaic.version = 11 : i64} {
  func.func @_mha_kernel(%arg0: i32, %arg1: memref<1x8x32xf32, #tpu.memory_space<vmem>>, %arg2: memref<32x96xbf16, #tpu.memory_space<vmem>>, %arg3: memref<1x96xf32, #tpu.memory_space<vmem>>, %arg4: memref<32x32xbf16, #tpu.memory_space<vmem>>, %arg5: memref<1x32xf32, #tpu.memory_space<vmem>>, %arg6: memref<1x8x32xf32, #tpu.memory_space<vmem>>) attributes {dimension_semantics = [#tpu.dimension_semantics<parallel>], iteration_bounds = array<i64: 2>, scalar_prefetch = 0 : i64, scratch_operands = 0 : i64, tpu.core_type = #tpu.core_type<tc>, window_params = [{transform_indices = @transform_0, window_bounds = array<i64: 1, 8, 32>}, {pipeline_mode = #tpu.pipeline_mode<synchronous>, transform_indices = @transform_1, window_bounds = array<i64: 32, 96>}, {pipeline_mode = #tpu.pipeline_mode<synchronous>, transform_indices = @transform_2, window_bounds = array<i64: 1, 96>}, {pipeline_mode = #tpu.pipeline_mode<synchronous>, transform_indices = @transform_3, window_bounds = array<i64: 32, 32>}, {pipeline_mode = #tpu.pipeline_mode<synchronous>, transform_indices = @transform_4, window_bounds = array<i64: 1, 32>}, {transform_indices = @transform_5, window_bounds = array<i64: 1, 8, 32>}]} {
    %c0 = arith.constant 0 : index
    %c0_0 = arith.constant 0 : index
    %c0_1 = arith.constant 0 : index
    %0 = vector.load %arg1[%c0, %c0_0, %c0_1] : memref<1x8x32xf32, #tpu.memory_space<vmem>>, vector<1x8x32xf32>
    %1 = vector.shape_cast %0 : vector<1x8x32xf32> to vector<8x32xf32>
    %2 = arith.truncf %1 : vector<8x32xf32> to vector<8x32xbf16>
    %c0_2 = arith.constant 0 : index
    %c0_3 = arith.constant 0 : index
    %3 = vector.load %arg2[%c0_2, %c0_3] : memref<32x96xbf16, #tpu.memory_space<vmem>>, vector<32x96xbf16>
    %cst = arith.constant dense<0.000000e+00> : vector<8x96xf32>
    %4 = tpu.matmul %2, %3, %cst {dimension_numbers = #tpu.dot_dimension_numbers<[1], [0], [0], [1], [0, 0, 1, 1], [], []>} : vector<8x32xbf16>, vector<32x96xbf16>, vector<8x96xf32> -> vector<8x96xf32>
    %c0_4 = arith.constant 0 : index
    %c0_5 = arith.constant 0 : index
    %5 = vector.load %arg3[%c0_4, %c0_5] : memref<1x96xf32, #tpu.memory_space<vmem>>, vector<1x96xf32>
    %6 = vector.broadcast %5 : vector<1x96xf32> to vector<8x96xf32>
    %7 = arith.addf %4, %6 : vector<8x96xf32>
    %8 = vector.extract_strided_slice %7 {offsets = [0, 0], sizes = [8, 32], strides = [1, 1]} : vector<8x96xf32> to vector<8x32xf32>
    %cst_6 = arith.constant 0.353553385 : f32
    %9 = vector.broadcast %cst_6 : f32 to vector<8x32xf32>
    %10 = arith.mulf %8, %9 : vector<8x32xf32>
    %11 = arith.truncf %10 : vector<8x32xf32> to vector<8x32xbf16>
    %12 = vector.extract_strided_slice %7 {offsets = [0, 32], sizes = [8, 32], strides = [1, 1]} : vector<8x96xf32> to vector<8x32xf32>
    %13 = arith.truncf %12 : vector<8x32xf32> to vector<8x32xbf16>
    %14 = vector.extract_strided_slice %7 {offsets = [0, 64], sizes = [8, 32], strides = [1, 1]} : vector<8x96xf32> to vector<8x32xf32>
    %15 = arith.truncf %14 : vector<8x32xf32> to vector<8x32xbf16>
    %16 = vector.extract_strided_slice %11 {offsets = [0, 0], sizes = [8, 8], strides = [1, 1]} : vector<8x32xbf16> to vector<8x8xbf16>
    %17 = vector.extract_strided_slice %11 {offsets = [0, 8], sizes = [8, 8], strides = [1, 1]} : vector<8x32xbf16> to vector<8x8xbf16>
    %18 = vector.extract_strided_slice %11 {offsets = [0, 16], sizes = [8, 8], strides = [1, 1]} : vector<8x32xbf16> to vector<8x8xbf16>
    %19 = vector.extract_strided_slice %11 {offsets = [0, 24], sizes = [8, 8], strides = [1, 1]} : vector<8x32xbf16> to vector<8x8xbf16>
    %20 = vector.shape_cast %16 : vector<8x8xbf16> to vector<1x8x8xbf16>
    %21 = vector.shape_cast %17 : vector<8x8xbf16> to vector<1x8x8xbf16>
    %22 = vector.shape_cast %18 : vector<8x8xbf16> to vector<1x8x8xbf16>
    %23 = vector.shape_cast %19 : vector<8x8xbf16> to vector<1x8x8xbf16>
    %24 = tpu.concatenate %20, %21, %22, %23 in 0 : vector<1x8x8xbf16>, vector<1x8x8xbf16>, vector<1x8x8xbf16>, vector<1x8x8xbf16> -> vector<4x8x8xbf16>
    %25 = vector.extract_strided_slice %13 {offsets = [0, 0], sizes = [8, 8], strides = [1, 1]} : vector<8x32xbf16> to vector<8x8xbf16>
    %26 = vector.extract_strided_slice %13 {offsets = [0, 8], sizes = [8, 8], strides = [1, 1]} : vector<8x32xbf16> to vector<8x8xbf16>
    %27 = vector.extract_strided_slice %13 {offsets = [0, 16], sizes = [8, 8], strides = [1, 1]} : vector<8x32xbf16> to vector<8x8xbf16>
    %28 = vector.extract_strided_slice %13 {offsets = [0, 24], sizes = [8, 8], strides = [1, 1]} : vector<8x32xbf16> to vector<8x8xbf16>
    %29 = vector.shape_cast %25 : vector<8x8xbf16> to vector<1x8x8xbf16>
    %30 = vector.shape_cast %26 : vector<8x8xbf16> to vector<1x8x8xbf16>
    %31 = vector.shape_cast %27 : vector<8x8xbf16> to vector<1x8x8xbf16>
    %32 = vector.shape_cast %28 : vector<8x8xbf16> to vector<1x8x8xbf16>
    %33 = tpu.concatenate %29, %30, %31, %32 in 0 : vector<1x8x8xbf16>, vector<1x8x8xbf16>, vector<1x8x8xbf16>, vector<1x8x8xbf16> -> vector<4x8x8xbf16>
    %34 = vector.extract_strided_slice %15 {offsets = [0, 0], sizes = [8, 8], strides = [1, 1]} : vector<8x32xbf16> to vector<8x8xbf16>
    %35 = vector.extract_strided_slice %15 {offsets = [0, 8], sizes = [8, 8], strides = [1, 1]} : vector<8x32xbf16> to vector<8x8xbf16>
    %36 = vector.extract_strided_slice %15 {offsets = [0, 16], sizes = [8, 8], strides = [1, 1]} : vector<8x32xbf16> to vector<8x8xbf16>
    %37 = vector.extract_strided_slice %15 {offsets = [0, 24], sizes = [8, 8], strides = [1, 1]} : vector<8x32xbf16> to vector<8x8xbf16>
    %38 = vector.shape_cast %34 : vector<8x8xbf16> to vector<1x8x8xbf16>
    %39 = vector.shape_cast %35 : vector<8x8xbf16> to vector<1x8x8xbf16>
    %40 = vector.shape_cast %36 : vector<8x8xbf16> to vector<1x8x8xbf16>
    %41 = vector.shape_cast %37 : vector<8x8xbf16> to vector<1x8x8xbf16>
    %42 = tpu.concatenate %38, %39, %40, %41 in 0 : vector<1x8x8xbf16>, vector<1x8x8xbf16>, vector<1x8x8xbf16>, vector<1x8x8xbf16> -> vector<4x8x8xbf16>
    "tpu.trace_start"() <{level = 10 : i32, message = "nqd,nkd->nqk"}> : () -> ()
    %cst_7 = arith.constant dense<0.000000e+00> : vector<4x8x8xf32>
    %43 = tpu.matmul %24, %33, %cst_7 {dimension_numbers = #tpu.dot_dimension_numbers<[2], [2], [1], [1], [0, 0, 0, 1, 1, 1], [0], [0]>} : vector<4x8x8xbf16>, vector<4x8x8xbf16>, vector<4x8x8xf32> -> vector<4x8x8xf32>
    "tpu.trace_stop"() : () -> ()
    %cst_8 = arith.constant dense<0xFF800000> : vector<4x8xf32>
    %44 = vector.multi_reduction <maximumf>, %43, %cst_8 [2] : vector<4x8x8xf32> to vector<4x8xf32>
    %45 = vector.shape_cast %44 : vector<4x8xf32> to vector<4x8x1xf32>
    %46 = vector.broadcast %45 : vector<4x8x1xf32> to vector<4x8x8xf32>
    %47 = arith.subf %43, %46 : vector<4x8x8xf32>
    %48 = math.exp %47 : vector<4x8x8xf32>
    %cst_9 = arith.constant dense<0.000000e+00> : vector<4x8xf32>
    %49 = vector.multi_reduction <add>, %48, %cst_9 [2] : vector<4x8x8xf32> to vector<4x8xf32>
    %50 = vector.shape_cast %49 : vector<4x8xf32> to vector<4x8x1xf32>
    %cst_10 = arith.constant 1.000000e+00 : f32
    %51 = vector.broadcast %cst_10 : f32 to vector<4x8x1xf32>
    %52 = arith.divf %51, %50 : vector<4x8x1xf32>
    %53 = vector.broadcast %52 : vector<4x8x1xf32> to vector<4x8x8xf32>
    %54 = arith.mulf %48, %53 : vector<4x8x8xf32>
    %55 = arith.truncf %54 : vector<4x8x8xf32> to vector<4x8x8xbf16>
    "tpu.trace_start"() <{level = 10 : i32, message = "nqk,nkd->nqd"}> : () -> ()
    %cst_11 = arith.constant dense<0.000000e+00> : vector<4x8x8xf32>
    %56 = tpu.matmul %55, %42, %cst_11 {dimension_numbers = #tpu.dot_dimension_numbers<[2], [1], [1], [2], [0, 0, 0, 1, 1, 2], [0], [0]>} : vector<4x8x8xbf16>, vector<4x8x8xbf16>, vector<4x8x8xf32> -> vector<4x8x8xf32>
    "tpu.trace_stop"() : () -> ()
    %57 = vector.extract_strided_slice %56 {offsets = [0, 0, 0], sizes = [1, 8, 8], strides = [1, 1, 1]} : vector<4x8x8xf32> to vector<1x8x8xf32>
    %58 = vector.shape_cast %57 : vector<1x8x8xf32> to vector<8x8xf32>
    %59 = vector.extract_strided_slice %56 {offsets = [1, 0, 0], sizes = [1, 8, 8], strides = [1, 1, 1]} : vector<4x8x8xf32> to vector<1x8x8xf32>
    %60 = vector.shape_cast %59 : vector<1x8x8xf32> to vector<8x8xf32>
    %61 = vector.extract_strided_slice %56 {offsets = [2, 0, 0], sizes = [1, 8, 8], strides = [1, 1, 1]} : vector<4x8x8xf32> to vector<1x8x8xf32>
    %62 = vector.shape_cast %61 : vector<1x8x8xf32> to vector<8x8xf32>
    %63 = vector.extract_strided_slice %56 {offsets = [3, 0, 0], sizes = [1, 8, 8], strides = [1, 1, 1]} : vector<4x8x8xf32> to vector<1x8x8xf32>
    %64 = vector.shape_cast %63 : vector<1x8x8xf32> to vector<8x8xf32>
    %65 = tpu.concatenate %58, %60, %62, %64 in 1 : vector<8x8xf32>, vector<8x8xf32>, vector<8x8xf32>, vector<8x8xf32> -> vector<8x32xf32>
    %66 = arith.truncf %65 : vector<8x32xf32> to vector<8x32xbf16>
    %c0_12 = arith.constant 0 : index
    %c0_13 = arith.constant 0 : index
    %67 = vector.load %arg4[%c0_12, %c0_13] : memref<32x32xbf16, #tpu.memory_space<vmem>>, vector<32x32xbf16>
    %cst_14 = arith.constant dense<0.000000e+00> : vector<8x32xf32>
    %68 = tpu.matmul %66, %67, %cst_14 {dimension_numbers = #tpu.dot_dimension_numbers<[1], [0], [0], [1], [0, 0, 1, 1], [], []>} : vector<8x32xbf16>, vector<32x32xbf16>, vector<8x32xf32> -> vector<8x32xf32>
    %c0_15 = arith.constant 0 : index
    %c0_16 = arith.constant 0 : index
    %69 = vector.load %arg5[%c0_15, %c0_16] : memref<1x32xf32, #tpu.memory_space<vmem>>, vector<1x32xf32>
    %70 = vector.broadcast %69 : vector<1x32xf32> to vector<8x32xf32>
    %71 = arith.addf %68, %70 : vector<8x32xf32>
    %72 = vector.shape_cast %71 : vector<8x32xf32> to vector<1x8x32xf32>
    %c0_17 = arith.constant 0 : index
    %c0_18 = arith.constant 0 : index
    %c0_19 = arith.constant 0 : index
    %73 = vector.load %arg6[%c0_17, %c0_18, %c0_19] : memref<1x8x32xf32, #tpu.memory_space<vmem>>, vector<1x8x32xf32>
    tpu.vector_store %arg6[%c0_17, %c0_18, %c0_19], %72 {strides = array<i32>} : memref<1x8x32xf32, #tpu.memory_space<vmem>>, vector<1x8x32xf32>,
    return
  }
  func.func @transform_0(%arg0: i32) -> (i32, i32, i32) {
    %c0_i32 = arith.constant 0 : i32
    %c0_i32_0 = arith.constant 0 : i32
    %c0_i32_1 = arith.constant 0 : i32
    return %arg0, %c0_i32, %c0_i32_0 : i32, i32, i32
  }
  func.func @transform_1(%arg0: i32) -> (i32, i32) {
    %c0_i32 = arith.constant 0 : i32
    %c0_i32_0 = arith.constant 0 : i32
    %c0_i32_1 = arith.constant 0 : i32
    return %c0_i32, %c0_i32_0 : i32, i32
  }
  func.func @transform_2(%arg0: i32) -> (i32, i32) {
    %c0_i32 = arith.constant 0 : i32
    %c0_i32_0 = arith.constant 0 : i32
    %c0_i32_1 = arith.constant 0 : i32
    return %c0_i32, %c0_i32_0 : i32, i32
  }
  func.func @transform_3(%arg0: i32) -> (i32, i32) {
    %c0_i32 = arith.constant 0 : i32
    %c0_i32_0 = arith.constant 0 : i32
    %c0_i32_1 = arith.constant 0 : i32
    return %c0_i32, %c0_i32_0 : i32, i32
  }
  func.func @transform_4(%arg0: i32) -> (i32, i32) {
    %c0_i32 = arith.constant 0 : i32
    %c0_i32_0 = arith.constant 0 : i32
    %c0_i32_1 = arith.constant 0 : i32
    return %c0_i32, %c0_i32_0 : i32, i32
  }
  func.func @transform_5(%arg0: i32) -> (i32, i32, i32) {
    %c0_i32 = arith.constant 0 : i32
    %c0_i32_0 = arith.constant 0 : i32
    %c0_i32_1 = arith.constant 0 : i32
    return %arg0, %c0_i32, %c0_i32_0 : i32, i32, i32
  }
}

</mosaic_0001>

<llo_original>
// kernel: tpu_custom_call.1
$region0: #{tpu_custom_call.1}
  #allocation0 [shape = 'u32[]', space=smem, size = 0x4, offset = 0x4, fixed_abs, tag = 'smem constant byte address 0x4 - core index']
  #allocation1 [shape = 'u32[144,128]{1,0:T(1,128)}', space=vmem, size = 0x12000, scoped, tag = 'internal scratch']
  %s0 = inlined_call_operand.hbm [shape: f32[2,8,32], index: 0, kind: input, shape index: {}]
  %s1 = inlined_call_operand.hbm [shape: bf16[32,96], index: 1, kind: input, shape index: {}]
  %s2 = inlined_call_operand.vmem [shape: f32[1,96], index: 2, kind: input, shape index: {}]
  %s3 = inlined_call_operand.hbm [shape: bf16[32,32], index: 3, kind: input, shape index: {}]
  %s4 = inlined_call_operand.vmem [shape: f32[1,32], index: 4, kind: input, shape index: {}]
  %s5 = inlined_call_operand.hbm [shape: f32[2,8,32], index: 5, kind: output, shape index: {}]
  %s6 = sld [smem:[#allocation0]]
  $region65: #{tpu_custom_call.1} parent=0
    _
  %s8 = ssub.s32 1, %s6
  %s9 = scalar_select 0, %s8, %s6
  $region1: #{tpu_custom_call.1} parent=0
    #allocation2 [shape = 'u8[8192]{0}', space=vmem, size = 0x2000, scoped, tag = 'input window, operand 0']
    #allocation3 [shape = 's32[2]{0}', space=sflag, size = 0x8, scoped, tag = 'scoped memory for tpu_custom_call.1']
    #allocation4 [shape = 's32[2]{0}', space=sflag, size = 0x8, scoped, tag = 'scoped memory for tpu_custom_call.1']
    #allocation5 [shape = 'u8[8192]{0}', space=vmem, size = 0x2000, scoped, tag = 'input window, operand 1, single buffered']
    #allocation6 [shape = 's32[1]{0}', space=sflag, size = 0x4, scoped, tag = 'scoped memory for tpu_custom_call.1']
    #allocation7 [shape = 'u8[8192]{0}', space=vmem, size = 0x2000, scoped, tag = 'input window, operand 3, single buffered']
    #allocation8 [shape = 'u8[8192]{0}', space=vmem, size = 0x2000, scoped, tag = 'output window, operand 0']
    %10 = vsyncpa [#allocation3], 0
    %s11 = scalar_lea.sflag [#allocation3], 1
    %12 = vsyncpa %s11, 0
    %13 = vsyncpa [#allocation6], 0
    %14 = vsyncpa [#allocation4], 0
    %s15 = scalar_lea.sflag [#allocation4], 1
    %16 = vsyncpa %s15, 0
    loop: start=0, step=1, limit=4
    $region2: #{tpu_custom_call.1} parent=1 // loop_pre_header
      _
    $region3: #{tpu_custom_call.1} parent=1 // loop_header
      %s18 = sphi 0, %s22
      %p19 = scmp.ge.s32.totalorder %s18, 4
      %s28 = sphi 0, %s30
      %s31 = sphi 0, %s28
      %s32 = sphi 0, %s31
      %s48 = sphi 0, %s32
      %s52 = sphi 0, %s52
      %s54 = sphi 0, %s52
      %s55 = sphi 0, %s54
      %s69 = sphi 0, %s55
      %s73 = sphi 0, %s73
      %s75 = sphi 0, %s73
      %s76 = sphi 0, %s75
      %s90 = sphi 0, %s76
      %s94 = sphi 0, %s94
      %s96 = sphi 0, %s94
      %s97 = sphi 0, %s96
      %s111 = sphi 0, %s97
      %s115 = sphi 0, %s115
      %s117 = sphi 0, %s115
      %s118 = sphi 0, %s117
      %s132 = sphi 0, %s118
      %s138 = sphi 0, %s140
      %s141 = sphi 0, %s138
      %s142 = sphi 0, %s141
      %s158 = sphi 0, %s142
    $region4: #{tpu_custom_call.1} parent=1 // loop_header_branch
      %21 = sbr.rel (%p19) target = $region8
    $region5: #{tpu_custom_call.1} parent=1 // loop_body
      %s23 = ssub.s32 %s18, 1
      %s24 = ssub.s32 %s18, 2
      %s25 = sadd.s32 %s18, 1
      %s26 = ssub.s32 %s18, %s25
      %p27 = scmp.eq.s32.totalorder %s26, 0
      %s29 = sadd.s32 %s28, 1
      %s30 = scalar_select %p27, %s28, %s29
      %p33 = pneg %p27
      %p34 = scmp.eq.s32.totalorder %s18, 1
      %p35 = por %p33, %p34
      %p36 = scmp.ne.s32.totalorder %s28, %s31
      %p37 = scmp.eq.s32.totalorder %s18, 0
      %p38 = por %p36, %p37
      %p39 = scmp.ne.s32.totalorder %s28, %s31
      %p40 = scmp.eq.s32.totalorder %s23, 1
      %p41 = por %p39, %p40
      %p42 = scmp.ne.s32.totalorder %s31, %s32
      %p43 = scmp.eq.s32.totalorder %s23, 0
      %p44 = por %p42, %p43
      %p45 = scmp.ne.s32.totalorder %s31, %s32
      %p46 = scmp.eq.s32.totalorder %s24, 1
      %p47 = por %p45, %p46
      %p49 = scmp.ne.s32.totalorder %s32, %s48
      %p50 = scmp.eq.s32.totalorder %s24, 0
      %p51 = por %p49, %p50
      %s53 = sadd.s32 %s52, 1
      %p56 = scmp.eq.s32.totalorder %s18, 1
      %p57 = scmp.ne.s32.totalorder %s52, %s54
      %p58 = scmp.eq.s32.totalorder %s18, 0
      %p59 = por %p57, %p58
      %p60 = scmp.ne.s32.totalorder %s52, %s54
      %p61 = scmp.eq.s32.totalorder %s23, 1
      %p62 = por %p60, %p61
      %p63 = scmp.ne.s32.totalorder %s54, %s55
      %p64 = scmp.eq.s32.totalorder %s23, 0
      %p65 = por %p63, %p64
      %p66 = scmp.ne.s32.totalorder %s54, %s55
      %p67 = scmp.eq.s32.totalorder %s24, 1
      %p68 = por %p66, %p67
      %p70 = scmp.ne.s32.totalorder %s55, %s69
      %p71 = scmp.eq.s32.totalorder %s24, 0
      %p72 = por %p70, %p71
      %s74 = sadd.s32 %s73, 1
      %p77 = scmp.eq.s32.totalorder %s18, 1
      %p78 = scmp.ne.s32.totalorder %s73, %s75
      %p79 = scmp.eq.s32.totalorder %s18, 0
      %p80 = por %p78, %p79
      %p81 = scmp.ne.s32.totalorder %s73, %s75
      %p82 = scmp.eq.s32.totalorder %s23, 1
      %p83 = por %p81, %p82
      %p84 = scmp.ne.s32.totalorder %s75, %s76
      %p85 = scmp.eq.s32.totalorder %s23, 0
      %p86 = por %p84, %p85
      %p87 = scmp.ne.s32.totalorder %s75, %s76
      %p88 = scmp.eq.s32.totalorder %s24, 1
      %p89 = por %p87, %p88
      %p91 = scmp.ne.s32.totalorder %s76, %s90
      %p92 = scmp.eq.s32.totalorder %s24, 0
      %p93 = por %p91, %p92
      %s95 = sadd.s32 %s94, 1
      %p98 = scmp.eq.s32.totalorder %s18, 1
      %p99 = scmp.ne.s32.totalorder %s94, %s96
      %p100 = scmp.eq.s32.totalorder %s18, 0
      %p101 = por %p99, %p100
      %p102 = scmp.ne.s32.totalorder %s94, %s96
      %p103 = scmp.eq.s32.totalorder %s23, 1
      %p104 = por %p102, %p103
      %p105 = scmp.ne.s32.totalorder %s96, %s97
      %p106 = scmp.eq.s32.totalorder %s23, 0
      %p107 = por %p105, %p106
      %p108 = scmp.ne.s32.totalorder %s96, %s97
      %p109 = scmp.eq.s32.totalorder %s24, 1
      %p110 = por %p108, %p109
      %p112 = scmp.ne.s32.totalorder %s97, %s111
      %p113 = scmp.eq.s32.totalorder %s24, 0
      %p114 = por %p112, %p113
      %s116 = sadd.s32 %s115, 1
      %p119 = scmp.eq.s32.totalorder %s18, 1
      %p120 = scmp.ne.s32.totalorder %s115, %s117
      %p121 = scmp.eq.s32.totalorder %s18, 0
      %p122 = por %p120, %p121
      %p123 = scmp.ne.s32.totalorder %s115, %s117
      %p124 = scmp.eq.s32.totalorder %s23, 1
      %p125 = por %p123, %p124
      %p126 = scmp.ne.s32.totalorder %s117, %s118
      %p127 = scmp.eq.s32.totalorder %s23, 0
      %p128 = por %p126, %p127
      %p129 = scmp.ne.s32.totalorder %s117, %s118
      %p130 = scmp.eq.s32.totalorder %s24, 1
      %p131 = por %p129, %p130
      %p133 = scmp.ne.s32.totalorder %s118, %s132
      %p134 = scmp.eq.s32.totalorder %s24, 0
      %p135 = por %p133, %p134
      %s136 = ssub.s32 %s18, %s25
      %p137 = scmp.eq.s32.totalorder %s136, 0
      %s139 = sadd.s32 %s138, 1
      %s140 = scalar_select %p137, %s138, %s139
      %p143 = pneg %p137
      %p144 = scmp.eq.s32.totalorder %s18, 1
      %p145 = por %p143, %p144
      %p146 = scmp.ne.s32.totalorder %s138, %s141
      %p147 = scmp.eq.s32.totalorder %s18, 0
      %p148 = por %p146, %p147
      %p149 = scmp.ne.s32.totalorder %s138, %s141
      %p150 = scmp.eq.s32.totalorder %s23, 1
      %p151 = por %p149, %p150
      %p152 = scmp.ne.s32.totalorder %s141, %s142
      %p153 = scmp.eq.s32.totalorder %s23, 0
      %p154 = por %p152, %p153
      %p155 = scmp.ne.s32.totalorder %s141, %s142
      %p156 = scmp.eq.s32.totalorder %s24, 1
      %p157 = por %p155, %p156
      %p159 = scmp.ne.s32.totalorder %s142, %s158
      %p160 = scmp.eq.s32.totalorder %s24, 0
      %p161 = por %p159, %p160
      %p162 = scmp.le.s32.totalorder 1, %s18
      %p163 = scmp.lt.s32.totalorder %s18, 3
      %p164 = pnand %p162, %p163
      %p165 = pneg %p164
      // Predicated region
      $region9: #{tpu_custom_call.1} parent=5 // pred_check
        _
      $region10: #{tpu_custom_call.1} parent=5 // pred_check_branch
        %167 = sbr.rel (%p164) target = $region12
      $region11: #{tpu_custom_call.1} parent=5 // pred_region
        %s168 = ssub.s32 %s18, 1
        // Predicated region
        $region13: #{tpu_custom_call.1} parent=11 // pred_check
          %p169 = pneg %p65
        $region14: #{tpu_custom_call.1} parent=11 // pred_check_branch
          %171 = sbr.rel (%p169) target = $region16
        $region15: #{tpu_custom_call.1} parent=11 // pred_region
          %s173 = ssub.s32 256, 256
          %174 = vsyncadd [#allocation6], %s173
          %s175 = sshll.u32 [#allocation5], 4
          %s176 = int_to_ptr.vmem [resolvable:$true] %s175
          %181 = dma.hbm_to_vmem [thread:$0]  %s1, 256, %s176, [#allocation6], 64, 64, 4
        $region16: #{tpu_custom_call.1} parent=11 // pred_fallthru
          _
        // Predicated region
        $region17: #{tpu_custom_call.1} parent=11 // pred_check
          %p182 = pneg %p86
        $region18: #{tpu_custom_call.1} parent=11 // pred_check_branch
          %184 = sbr.rel (%p182) target = $region20
        $region19: #{tpu_custom_call.1} parent=11 // pred_region
          _
        $region20: #{tpu_custom_call.1} parent=11 // pred_fallthru
          _
        // Predicated region
        $region21: #{tpu_custom_call.1} parent=11 // pred_check
          %p185 = pneg %p107
        $region22: #{tpu_custom_call.1} parent=11 // pred_check_branch
          %187 = sbr.rel (%p185) target = $region24
        $region23: #{tpu_custom_call.1} parent=11 // pred_region
          %s189 = ssub.s32 256, 256
          %190 = vsyncadd [#allocation6], %s189
          %s191 = sshll.u32 [#allocation7], 4
          %s192 = int_to_ptr.vmem [resolvable:$true] %s191
          %197 = dma.hbm_to_vmem [thread:$0]  %s3, 256, %s192, [#allocation6], 64, 64, 4
        $region24: #{tpu_custom_call.1} parent=11 // pred_fallthru
          _
        // Predicated region
        $region25: #{tpu_custom_call.1} parent=11 // pred_check
          %p198 = pneg %p128
        $region26: #{tpu_custom_call.1} parent=11 // pred_check_branch
          %200 = sbr.rel (%p198) target = $region28
        $region27: #{tpu_custom_call.1} parent=11 // pred_region
          _
        $region28: #{tpu_custom_call.1} parent=11 // pred_fallthru
          _
      $region12: #{tpu_custom_call.1} parent=5 // pred_fallthru
        _
      %p201 = scmp.lt.s32.totalorder %s18, 2
      // Predicated region
      $region29: #{tpu_custom_call.1} parent=5 // pred_check
        %p202 = pneg %p201
      $region30: #{tpu_custom_call.1} parent=5 // pred_check_branch
        %204 = sbr.rel (%p202) target = $region32
      $region31: #{tpu_custom_call.1} parent=5 // pred_region
        // Predicated region
        $region33: #{tpu_custom_call.1} parent=31 // pred_check
          %p205 = pneg %p38
        $region34: #{tpu_custom_call.1} parent=31 // pred_check_branch
          %207 = sbr.rel (%p205) target = $region36
        $region35: #{tpu_custom_call.1} parent=31 // pred_region
          %s208 = sand.u32 %s28, 1
          %s209 = scalar_lea.sflag [#allocation3], %s208
          %s210 = sand.u32 %s28, 1
          %s211 = smul.addr %s210, 8
          %s212 = scalar_lea.vmem [#allocation2], %s211
          %s214 = ssub.s32 128, 128
          %215 = vsyncadd %s209, %s214
          %s216 = smul.addr %s18, 128
          %s217 = scalar_lea.hbm %s0, %s216
          %s219 = sshll.u32 %s212, 4
          %s220 = int_to_ptr.vmem [resolvable:$true] %s219
          %222 = dma.hbm_to_vmem [thread:$0]  %s217, 128, %s220, %s209
        $region36: #{tpu_custom_call.1} parent=31 // pred_fallthru
          _
      $region32: #{tpu_custom_call.1} parent=5 // pred_fallthru
        _
      %p223 = scmp.le.s32.totalorder 1, %s18
      %p224 = scmp.lt.s32.totalorder %s18, 3
      %p225 = pnand %p223, %p224
      %p226 = pneg %p225
      // Predicated region
      $region37: #{tpu_custom_call.1} parent=5 // pred_check
        _
      $region38: #{tpu_custom_call.1} parent=5 // pred_check_branch
        %228 = sbr.rel (%p225) target = $region40
      $region39: #{tpu_custom_call.1} parent=5 // pred_region
        %s229 = ssub.s32 %s18, 1
        %s230 = sand.u32 %s31, 1
        %s231 = scalar_lea.sflag [#allocation3], %s230
        %s232 = sand.u32 %s31, 1
        %s233 = smul.addr %s232, 8
        %s234 = scalar_lea.vmem [#allocation2], %s233
        // Predicated region
        $region41: #{tpu_custom_call.1} parent=39 // pred_check
          %p235 = pneg %p44
        $region42: #{tpu_custom_call.1} parent=39 // pred_check_branch
          %237 = sbr.rel (%p235) target = $region44
        $region43: #{tpu_custom_call.1} parent=39 // pred_region
          %238 = dma.done %s231, 128
        $region44: #{tpu_custom_call.1} parent=39 // pred_fallthru
          _
        // Predicated region
        $region45: #{tpu_custom_call.1} parent=39 // pred_check
          %p239 = pneg %p65
        $region46: #{tpu_custom_call.1} parent=39 // pred_check_branch
          %241 = sbr.rel (%p239) target = $region48
        $region47: #{tpu_custom_call.1} parent=39 // pred_region
          %242 = dma.done [#allocation6], 256
        $region48: #{tpu_custom_call.1} parent=39 // pred_fallthru
          _
        // Predicated region
        $region49: #{tpu_custom_call.1} parent=39 // pred_check
          %p243 = pneg %p107
        $region50: #{tpu_custom_call.1} parent=39 // pred_check_branch
          %245 = sbr.rel (%p243) target = $region52
        $region51: #{tpu_custom_call.1} parent=39 // pred_region
          %246 = dma.done [#allocation6], 256
        $region52: #{tpu_custom_call.1} parent=39 // pred_fallthru
          _
        %s247 = sand.u32 %s31, 1
        %s248 = scalar_lea.sflag [#allocation3], %s247
        %s249 = sand.u32 %s31, 1
        %s250 = smul.addr %s249, 8
        %s251 = scalar_lea.vmem [#allocation2], %s250
        %p252 = pneg %p44
        %p253 = pneg %p41
        %p254 = pneg %p65
        %p255 = pneg %p62
        %p256 = pneg %p86
        %p257 = pneg %p83
        %p258 = pneg %p107
        %p259 = pneg %p104
        %p260 = pneg %p128
        %p261 = pneg %p125
        %p262 = pneg %p154
        %p263 = pneg %p151
        %s264 = sand.u32 %s141, 1
        %s265 = scalar_lea.sflag [#allocation4], %s264
        %s266 = sand.u32 %s141, 1
        %s267 = smul.addr %s266, 8
        %s268 = scalar_lea.vmem [#allocation8], %s267
        %v270 = vld [vmem:[%s234] sm:$0xff]
        %v271 = vpack.c.bf16 %v270, %v270
        %v272 = vld [vmem:[#allocation5] sm:$0xf]
        %v273 = vld [vmem:[#allocation5 + $0x4] sm:$0xf]
        %v274 = vld [vmem:[#allocation5 + $0x8] sm:$0xf]
        %v275 = vld [vmem:[#allocation5 + $0xc] sm:$0xf]
        %v276 = vld [vmem:[%s2] sm:$0x1]
        %v278 = vlaneseq
        %v279 = vshrl.u32 %v278, 7
        %v280 = vsub.s32 0, %v279
        %v281 = vrot.slane %v276, %v280
        %v287 = vunpack.c.l.b16 %v272
        %v288 = vunpack.c.l.b16 %v273
        %v289 = vunpack.c.l.b16 %v274
        %v290 = vunpack.c.l.b16 %v275
        %v291 = vpack.c.b16 %v288, %v287
        %v292 = vpack.c.b16 %v290, %v289
        %vm295 = vcmask 261120
        %v297 = vsel %vm295, %v271, 0
        %299 = vmatprep.subr.bf16.mxu0 0
        %300 = vmatpush1.bf16.msra.mxu0 %v291
        %301 = vmatprep.subr.bf16.mxu0 0
        %302 = vmatpush1.bf16.msra.mxu0 %v292
        %303 = vmatprep.subr.bf16.mxu0 0
        %304 = vmatpush1.bf16.msra.mxu0 0
        %305 = vmatprep.subr.bf16.mxu0 0
        %306 = vmatpush1.bf16.msra.mxu0 0
        %307 = vmatprep.subr.bf16.mxu0 0
        %308 = vmatpush1.bf16.msra.mxu0 0
        %309 = vmatprep.subr.bf16.mxu0 0
        %310 = vmatpush1.bf16.msra.mxu0 0
        %311 = vmatprep.subr.bf16.mxu0 0
        %312 = vmatpush1.bf16.msra.mxu0 0
        %313 = vmatprep.subr.bf16.mxu0 0
        %314 = vmatpush1.bf16.msra.mxu0 0
        %315 = vmatprep.subr.bf16.mxu0 0
        %316 = vmatpush1.bf16.msra.mxu0 0
        %317 = vmatprep.subr.bf16.mxu0 0
        %318 = vmatpush1.bf16.msra.mxu0 0
        %319 = vmatprep.subr.bf16.mxu0 0
        %320 = vmatpush1.bf16.msra.mxu0 0
        %321 = vmatprep.subr.bf16.mxu0 0
        %322 = vmatpush1.bf16.msra.mxu0 0
        %323 = vmatprep.subr.bf16.mxu0 0
        %324 = vmatpush1.bf16.msra.mxu0 0
        %325 = vmatprep.subr.bf16.mxu0 0
        %326 = vmatpush1.bf16.msra.mxu0 0
        %327 = vmatprep.subr.bf16.mxu0 0
        %328 = vmatpush1.bf16.msra.mxu0 0
        %329 = vmatprep.subr.bf16.mxu0 0
        %330 = vmatpush1.bf16.msra.mxu0 0
        %331 = vmatprep.mubr.bf16.mxu0 0
        %332 = vmatmul.mubr.bf16.gmra.mrb[0].mxu0 %v297
        %v333 = vpop.f32.mrb[0].mxu0
        %v334 = vadd.f32 %v281, %v333
        %v335 = vpop.f32.mrb[0].mxu0
        %v336 = vpop.f32.mrb[0].mxu0
        %v337 = vpop.f32.mrb[0].mxu0
        %338 = vdwg.mxu0
        %v339 = vmul.f32 %v334, 0.35355338
        %v340 = vpack.c.bf16 %v339, %v339
        %v341 = vpack.c.bf16 %v334, %v334
        %343 = vrot.lane.b32.xlu0 %v340, 120
        %v344 = vpop.permute.xlu0 %343
        %345 = vrot.lane.b32.xlu0 %v340, 112
        %v346 = vpop.permute.xlu0 %345
        %347 = vrot.lane.b32.xlu0 %v340, 104
        %v348 = vpop.permute.xlu0 %347
        %350 = vrot.lane.b32.xlu0 %v341, 120
        %v351 = vpop.permute.xlu0 %350
        %352 = vrot.lane.b32.xlu0 %v341, 112
        %v353 = vpop.permute.xlu0 %352
        %354 = vrot.lane.b32.xlu0 %v341, 104
        %v355 = vpop.permute.xlu0 %354
        %356 = vrot.lane.b32.xlu0 %v341, 96
        %v357 = vpop.permute.xlu0 %356
        %vm358 = vcmask 64512
        %v360 = vsel %vm358, %v340, 0
        %v363 = vsel %vm358, %v357, 0
        %365 = vmatprep.subr.bf16.mxu0 0
        %366 = vmatpush1.bf16.xpose.msra.mxu0 %v363
        %367 = vmatprep.subr.bf16.mxu0 0
        %368 = vmatpush1.bf16.xpose.msra.mxu0 0
        %369 = vmatprep.subr.bf16.mxu0 0
        %370 = vmatpush1.bf16.xpose.msra.mxu0 0
        %371 = vmatprep.subr.bf16.mxu0 0
        %372 = vmatpush1.bf16.xpose.msra.mxu0 0
        %373 = vmatprep.subr.bf16.mxu0 0
        %374 = vmatpush1.bf16.xpose.msra.mxu0 0
        %375 = vmatprep.subr.bf16.mxu0 0
        %376 = vmatpush1.bf16.xpose.msra.mxu0 0
        %377 = vmatprep.subr.bf16.mxu0 0
        %378 = vmatpush1.bf16.xpose.msra.mxu0 0
        %379 = vmatprep.subr.bf16.mxu0 0
        %380 = vmatpush1.bf16.xpose.msra.mxu0 0
        %381 = vmatprep.subr.bf16.mxu0 0
        %382 = vmatpush1.bf16.xpose.msra.mxu0 0
        %383 = vmatprep.subr.bf16.mxu0 0
        %384 = vmatpush1.bf16.xpose.msra.mxu0 0
        %385 = vmatprep.subr.bf16.mxu0 0
        %386 = vmatpush1.bf16.xpose.msra.mxu0 0
        %387 = vmatprep.subr.bf16.mxu0 0
        %388 = vmatpush1.bf16.xpose.msra.mxu0 0
        %389 = vmatprep.subr.bf16.mxu0 0
        %390 = vmatpush1.bf16.xpose.msra.mxu0 0
        %391 = vmatprep.subr.bf16.mxu0 0
        %392 = vmatpush1.bf16.xpose.msra.mxu0 0
        %393 = vmatprep.subr.bf16.mxu0 0
        %394 = vmatpush1.bf16.xpose.msra.mxu0 0
        %395 = vmatprep.subr.bf16.mxu0 0
        %396 = vmatpush1.bf16.xpose.msra.mxu0 0
        %397 = vmatprep.mubr.bf16.mxu0 0
        %398 = vmatmul.mubr.bf16.gmra.mrb[0].mxu0 %v360
        %v399 = vpop.f32.mrb[0].mxu0
        %v400 = vadd.f32 0.0, %v399
        %v401 = vpop.f32.mrb[0].mxu0
        %v402 = vpop.f32.mrb[0].mxu0
        %v403 = vpop.f32.mrb[0].mxu0
        %404 = vdwg.mxu0
        %405 = vrot.lane.b32.xlu0 %v351, 96
        %v406 = vpop.permute.xlu0 %405
        %v408 = vsel %vm358, %v344, 0
        %v411 = vsel %vm358, %v406, 0
        %413 = vmatprep.subr.bf16.mxu0 0
        %414 = vmatpush1.bf16.xpose.msra.mxu0 %v411
        %415 = vmatprep.subr.bf16.mxu0 0
        %416 = vmatpush1.bf16.xpose.msra.mxu0 0
        %417 = vmatprep.subr.bf16.mxu0 0
        %418 = vmatpush1.bf16.xpose.msra.mxu0 0
        %419 = vmatprep.subr.bf16.mxu0 0
        %420 = vmatpush1.bf16.xpose.msra.mxu0 0
        %421 = vmatprep.subr.bf16.mxu0 0
        %422 = vmatpush1.bf16.xpose.msra.mxu0 0
        %423 = vmatprep.subr.bf16.mxu0 0
        %424 = vmatpush1.bf16.xpose.msra.mxu0 0
        %425 = vmatprep.subr.bf16.mxu0 0
        %426 = vmatpush1.bf16.xpose.msra.mxu0 0
        %427 = vmatprep.subr.bf16.mxu0 0
        %428 = vmatpush1.bf16.xpose.msra.mxu0 0
        %429 = vmatprep.subr.bf16.mxu0 0
        %430 = vmatpush1.bf16.xpose.msra.mxu0 0
        %431 = vmatprep.subr.bf16.mxu0 0
        %432 = vmatpush1.bf16.xpose.msra.mxu0 0
        %433 = vmatprep.subr.bf16.mxu0 0
        %434 = vmatpush1.bf16.xpose.msra.mxu0 0
        %435 = vmatprep.subr.bf16.mxu0 0
        %436 = vmatpush1.bf16.xpose.msra.mxu0 0
        %437 = vmatprep.subr.bf16.mxu0 0
        %438 = vmatpush1.bf16.xpose.msra.mxu0 0
        %439 = vmatprep.subr.bf16.mxu0 0
        %440 = vmatpush1.bf16.xpose.msra.mxu0 0
        %441 = vmatprep.subr.bf16.mxu0 0
        %442 = vmatpush1.bf16.xpose.msra.mxu0 0
        %443 = vmatprep.subr.bf16.mxu0 0
        %444 = vmatpush1.bf16.xpose.msra.mxu0 0
        %445 = vmatprep.mubr.bf16.mxu0 0
        %446 = vmatmul.mubr.bf16.gmra.mrb[0].mxu0 %v408
        %v447 = vpop.f32.mrb[0].mxu0
        %v448 = vadd.f32 0.0, %v447
        %v449 = vpop.f32.mrb[0].mxu0
        %v450 = vpop.f32.mrb[0].mxu0
        %v451 = vpop.f32.mrb[0].mxu0
        %452 = vdwg.mxu0
        %453 = vrot.lane.b32.xlu0 %v353, 96
        %v454 = vpop.permute.xlu0 %453
        %v456 = vsel %vm358, %v346, 0
        %v459 = vsel %vm358, %v454, 0
        %461 = vmatprep.subr.bf16.mxu0 0
        %462 = vmatpush1.bf16.xpose.msra.mxu0 %v459
        %463 = vmatprep.subr.bf16.mxu0 0
        %464 = vmatpush1.bf16.xpose.msra.mxu0 0
        %465 = vmatprep.subr.bf16.mxu0 0
        %466 = vmatpush1.bf16.xpose.msra.mxu0 0
        %467 = vmatprep.subr.bf16.mxu0 0
        %468 = vmatpush1.bf16.xpose.msra.mxu0 0
        %469 = vmatprep.subr.bf16.mxu0 0
        %470 = vmatpush1.bf16.xpose.msra.mxu0 0
        %471 = vmatprep.subr.bf16.mxu0 0
        %472 = vmatpush1.bf16.xpose.msra.mxu0 0
        %473 = vmatprep.subr.bf16.mxu0 0
        %474 = vmatpush1.bf16.xpose.msra.mxu0 0
        %475 = vmatprep.subr.bf16.mxu0 0
        %476 = vmatpush1.bf16.xpose.msra.mxu0 0
        %477 = vmatprep.subr.bf16.mxu0 0
        %478 = vmatpush1.bf16.xpose.msra.mxu0 0
        %479 = vmatprep.subr.bf16.mxu0 0
        %480 = vmatpush1.bf16.xpose.msra.mxu0 0
        %481 = vmatprep.subr.bf16.mxu0 0
        %482 = vmatpush1.bf16.xpose.msra.mxu0 0
        %483 = vmatprep.subr.bf16.mxu0 0
        %484 = vmatpush1.bf16.xpose.msra.mxu0 0
        %485 = vmatprep.subr.bf16.mxu0 0
        %486 = vmatpush1.bf16.xpose.msra.mxu0 0
        %487 = vmatprep.subr.bf16.mxu0 0
        %488 = vmatpush1.bf16.xpose.msra.mxu0 0
        %489 = vmatprep.subr.bf16.mxu0 0
        %490 = vmatpush1.bf16.xpose.msra.mxu0 0
        %491 = vmatprep.subr.bf16.mxu0 0
        %492 = vmatpush1.bf16.xpose.msra.mxu0 0
        %493 = vmatprep.mubr.bf16.mxu0 0
        %494 = vmatmul.mubr.bf16.gmra.mrb[0].mxu0 %v456
        %v495 = vpop.f32.mrb[0].mxu0
        %v496 = vadd.f32 0.0, %v495
        %v497 = vpop.f32.mrb[0].mxu0
        %v498 = vpop.f32.mrb[0].mxu0
        %v499 = vpop.f32.mrb[0].mxu0
        %500 = vdwg.mxu0
        %501 = vrot.lane.b32.xlu0 %v355, 96
        %v502 = vpop.permute.xlu0 %501
        %v504 = vsel %vm358, %v348, 0
        %v507 = vsel %vm358, %v502, 0
        %509 = vmatprep.subr.bf16.mxu0 0
        %510 = vmatpush1.bf16.xpose.msra.mxu0 %v507
        %511 = vmatprep.subr.bf16.mxu0 0
        %512 = vmatpush1.bf16.xpose.msra.mxu0 0
        %513 = vmatprep.subr.bf16.mxu0 0
        %514 = vmatpush1.bf16.xpose.msra.mxu0 0
        %515 = vmatprep.subr.bf16.mxu0 0
        %516 = vmatpush1.bf16.xpose.msra.mxu0 0
        %517 = vmatprep.subr.bf16.mxu0 0
        %518 = vmatpush1.bf16.xpose.msra.mxu0 0
        %519 = vmatprep.subr.bf16.mxu0 0
        %520 = vmatpush1.bf16.xpose.msra.mxu0 0
        %521 = vmatprep.subr.bf16.mxu0 0
        %522 = vmatpush1.bf16.xpose.msra.mxu0 0
        %523 = vmatprep.subr.bf16.mxu0 0
        %524 = vmatpush1.bf16.xpose.msra.mxu0 0
        %525 = vmatprep.subr.bf16.mxu0 0
        %526 = vmatpush1.bf16.xpose.msra.mxu0 0
        %527 = vmatprep.subr.bf16.mxu0 0
        %528 = vmatpush1.bf16.xpose.msra.mxu0 0
        %529 = vmatprep.subr.bf16.mxu0 0
        %530 = vmatpush1.bf16.xpose.msra.mxu0 0
        %531 = vmatprep.subr.bf16.mxu0 0
        %532 = vmatpush1.bf16.xpose.msra.mxu0 0
        %533 = vmatprep.subr.bf16.mxu0 0
        %534 = vmatpush1.bf16.xpose.msra.mxu0 0
        %535 = vmatprep.subr.bf16.mxu0 0
        %536 = vmatpush1.bf16.xpose.msra.mxu0 0
        %537 = vmatprep.subr.bf16.mxu0 0
        %538 = vmatpush1.bf16.xpose.msra.mxu0 0
        %539 = vmatprep.subr.bf16.mxu0 0
        %540 = vmatpush1.bf16.xpose.msra.mxu0 0
        %541 = vmatprep.mubr.bf16.mxu0 0
        %542 = vmatmul.mubr.bf16.gmra.mrb[0].mxu0 %v504
        %v543 = vpop.f32.mrb[0].mxu0
        %v544 = vadd.f32 0.0, %v543
        %v545 = vpop.f32.mrb[0].mxu0
        %v546 = vpop.f32.mrb[0].mxu0
        %v547 = vpop.f32.mrb[0].mxu0
        %548 = vdwg.mxu0
        %v549 = vsel %vm358, %v400, -inf
        %550 = vmax.xlane.f32.xlu0 %v549
        %v551 = vpop.xlane.xlu0 %550
        %v552 = vsel %vm358, %v448, -inf
        %553 = vmax.xlane.f32.xlu0 %v552
        %v554 = vpop.xlane.xlu0 %553
        %v555 = vsel %vm358, %v496, -inf
        %556 = vmax.xlane.f32.xlu0 %v555
        %v557 = vpop.xlane.xlu0 %556
        %v558 = vsel %vm358, %v544, -inf
        %559 = vmax.xlane.f32.xlu0 %v558
        %v560 = vpop.xlane.xlu0 %559
        %v561 = vsub.f32 %v400, %v551
        %v562 = vsub.f32 %v448, %v554
        %v563 = vsub.f32 %v496, %v557
        %v564 = vsub.f32 %v544, %v560
        %v565 = vmul.f32 %v561, 1.442695
        %v566 = vpow.pop %v565
        %v567 = vmul.f32 %v562, 1.442695
        %v568 = vpow.pop %v567
        %v569 = vmul.f32 %v563, 1.442695
        %v570 = vpow.pop %v569
        %v571 = vmul.f32 %v564, 1.442695
        %v572 = vpow.pop %v571
        %v573 = vsel %vm358, %v566, 0.0
        %574 = vadd.xlane.f32.xlu0 %v573
        %v575 = vpop.xlane.xlu0 %574
        %v576 = vsel %vm358, %v568, 0.0
        %577 = vadd.xlane.f32.xlu0 %v576
        %v578 = vpop.xlane.xlu0 %577
        %v579 = vsel %vm358, %v570, 0.0
        %580 = vadd.xlane.f32.xlu0 %v579
        %v581 = vpop.xlane.xlu0 %580
        %v582 = vsel %vm358, %v572, 0.0
        %583 = vadd.xlane.f32.xlu0 %v582
        %v584 = vpop.xlane.xlu0 %583
        %v585 = vrcp.pop %v575
        %v586 = vmul.f32 1.0, %v585
        %v587 = vrcp.pop %v578
        %v588 = vmul.f32 1.0, %v587
        %v589 = vrcp.pop %v581
        %v590 = vmul.f32 1.0, %v589
        %v591 = vrcp.pop %v584
        %v592 = vmul.f32 1.0, %v591
        %v593 = vmul.f32 %v566, %v586
        %v594 = vmul.f32 %v568, %v588
        %v595 = vmul.f32 %v570, %v590
        %v596 = vmul.f32 %v572, %v592
        %v597 = vpack.c.bf16 %v593, %v593
        %v598 = vpack.c.bf16 %v594, %v594
        %v599 = vpack.c.bf16 %v595, %v595
        %v600 = vpack.c.bf16 %v596, %v596
        %601 = vrot.lane.b32.xlu0 %v341, 64
        %v602 = vpop.permute.xlu0 %601
        %v604 = vsel %vm358, %v597, 0
        %vm606 = vcmask 1043456
        %v608 = vsel %vm606, %v602, 0
        %610 = vmatprep.subr.bf16.mxu0 0
        %611 = vmatpush1.bf16.msra.mxu0 %v608
        %612 = vmatprep.subr.bf16.mxu0 0
        %613 = vmatpush1.bf16.msra.mxu0 0
        %614 = vmatprep.subr.bf16.mxu0 0
        %615 = vmatpush1.bf16.msra.mxu0 0
        %616 = vmatprep.subr.bf16.mxu0 0
        %617 = vmatpush1.bf16.msra.mxu0 0
        %618 = vmatprep.subr.bf16.mxu0 0
        %619 = vmatpush1.bf16.msra.mxu0 0
        %620 = vmatprep.subr.bf16.mxu0 0
        %621 = vmatpush1.bf16.msra.mxu0 0
        %622 = vmatprep.subr.bf16.mxu0 0
        %623 = vmatpush1.bf16.msra.mxu0 0
        %624 = vmatprep.subr.bf16.mxu0 0
        %625 = vmatpush1.bf16.msra.mxu0 0
        %626 = vmatprep.subr.bf16.mxu0 0
        %627 = vmatpush1.bf16.msra.mxu0 0
        %628 = vmatprep.subr.bf16.mxu0 0
        %629 = vmatpush1.bf16.msra.mxu0 0
        %630 = vmatprep.subr.bf16.mxu0 0
        %631 = vmatpush1.bf16.msra.mxu0 0
        %632 = vmatprep.subr.bf16.mxu0 0
        %633 = vmatpush1.bf16.msra.mxu0 0
        %634 = vmatprep.subr.bf16.mxu0 0
        %635 = vmatpush1.bf16.msra.mxu0 0
        %636 = vmatprep.subr.bf16.mxu0 0
        %637 = vmatpush1.bf16.msra.mxu0 0
        %638 = vmatprep.subr.bf16.mxu0 0
        %639 = vmatpush1.bf16.msra.mxu0 0
        %640 = vmatprep.subr.bf16.mxu0 0
        %641 = vmatpush1.bf16.msra.mxu0 0
        %642 = vmatprep.mubr.bf16.mxu0 0
        %643 = vmatmul.mubr.bf16.gmra.mrb[0].mxu0 %v604
        %v644 = vpop.f32.mrb[0].mxu0
        %v645 = vadd.f32 0.0, %v644
        %v646 = vpop.f32.mrb[0].mxu0
        %v647 = vpop.f32.mrb[0].mxu0
        %v648 = vpop.f32.mrb[0].mxu0
        %649 = vdwg.mxu0
        %650 = vrot.lane.b32.xlu0 %v351, 64
        %v651 = vpop.permute.xlu0 %650
        %v653 = vsel %vm358, %v598, 0
        %v656 = vsel %vm606, %v651, 0
        %658 = vmatprep.subr.bf16.mxu0 0
        %659 = vmatpush1.bf16.msra.mxu0 %v656
        %660 = vmatprep.subr.bf16.mxu0 0
        %661 = vmatpush1.bf16.msra.mxu0 0
        %662 = vmatprep.subr.bf16.mxu0 0
        %663 = vmatpush1.bf16.msra.mxu0 0
        %664 = vmatprep.subr.bf16.mxu0 0
        %665 = vmatpush1.bf16.msra.mxu0 0
        %666 = vmatprep.subr.bf16.mxu0 0
        %667 = vmatpush1.bf16.msra.mxu0 0
        %668 = vmatprep.subr.bf16.mxu0 0
        %669 = vmatpush1.bf16.msra.mxu0 0
        %670 = vmatprep.subr.bf16.mxu0 0
        %671 = vmatpush1.bf16.msra.mxu0 0
        %672 = vmatprep.subr.bf16.mxu0 0
        %673 = vmatpush1.bf16.msra.mxu0 0
        %674 = vmatprep.subr.bf16.mxu0 0
        %675 = vmatpush1.bf16.msra.mxu0 0
        %676 = vmatprep.subr.bf16.mxu0 0
        %677 = vmatpush1.bf16.msra.mxu0 0
        %678 = vmatprep.subr.bf16.mxu0 0
        %679 = vmatpush1.bf16.msra.mxu0 0
        %680 = vmatprep.subr.bf16.mxu0 0
        %681 = vmatpush1.bf16.msra.mxu0 0
        %682 = vmatprep.subr.bf16.mxu0 0
        %683 = vmatpush1.bf16.msra.mxu0 0
        %684 = vmatprep.subr.bf16.mxu0 0
        %685 = vmatpush1.bf16.msra.mxu0 0
        %686 = vmatprep.subr.bf16.mxu0 0
        %687 = vmatpush1.bf16.msra.mxu0 0
        %688 = vmatprep.subr.bf16.mxu0 0
        %689 = vmatpush1.bf16.msra.mxu0 0
        %690 = vmatprep.mubr.bf16.mxu0 0
        %691 = vmatmul.mubr.bf16.gmra.mrb[0].mxu0 %v653
        %v692 = vpop.f32.mrb[0].mxu0
        %v693 = vadd.f32 0.0, %v692
        %v694 = vpop.f32.mrb[0].mxu0
        %v695 = vpop.f32.mrb[0].mxu0
        %v696 = vpop.f32.mrb[0].mxu0
        %697 = vdwg.mxu0
        %698 = vrot.lane.b32.xlu0 %v353, 64
        %v699 = vpop.permute.xlu0 %698
        %v701 = vsel %vm358, %v599, 0
        %v704 = vsel %vm606, %v699, 0
        %706 = vmatprep.subr.bf16.mxu0 0
        %707 = vmatpush1.bf16.msra.mxu0 %v704
        %708 = vmatprep.subr.bf16.mxu0 0
        %709 = vmatpush1.bf16.msra.mxu0 0
        %710 = vmatprep.subr.bf16.mxu0 0
        %711 = vmatpush1.bf16.msra.mxu0 0
        %712 = vmatprep.subr.bf16.mxu0 0
        %713 = vmatpush1.bf16.msra.mxu0 0
        %714 = vmatprep.subr.bf16.mxu0 0
        %715 = vmatpush1.bf16.msra.mxu0 0
        %716 = vmatprep.subr.bf16.mxu0 0
        %717 = vmatpush1.bf16.msra.mxu0 0
        %718 = vmatprep.subr.bf16.mxu0 0
        %719 = vmatpush1.bf16.msra.mxu0 0
        %720 = vmatprep.subr.bf16.mxu0 0
        %721 = vmatpush1.bf16.msra.mxu0 0
        %722 = vmatprep.subr.bf16.mxu0 0
        %723 = vmatpush1.bf16.msra.mxu0 0
        %724 = vmatprep.subr.bf16.mxu0 0
        %725 = vmatpush1.bf16.msra.mxu0 0
        %726 = vmatprep.subr.bf16.mxu0 0
        %727 = vmatpush1.bf16.msra.mxu0 0
        %728 = vmatprep.subr.bf16.mxu0 0
        %729 = vmatpush1.bf16.msra.mxu0 0
        %730 = vmatprep.subr.bf16.mxu0 0
        %731 = vmatpush1.bf16.msra.mxu0 0
        %732 = vmatprep.subr.bf16.mxu0 0
        %733 = vmatpush1.bf16.msra.mxu0 0
        %734 = vmatprep.subr.bf16.mxu0 0
        %735 = vmatpush1.bf16.msra.mxu0 0
        %736 = vmatprep.subr.bf16.mxu0 0
        %737 = vmatpush1.bf16.msra.mxu0 0
        %738 = vmatprep.mubr.bf16.mxu0 0
        %739 = vmatmul.mubr.bf16.gmra.mrb[0].mxu0 %v701
        %v740 = vpop.f32.mrb[0].mxu0
        %v741 = vadd.f32 0.0, %v740
        %v742 = vpop.f32.mrb[0].mxu0
        %v743 = vpop.f32.mrb[0].mxu0
        %v744 = vpop.f32.mrb[0].mxu0
        %745 = vdwg.mxu0
        %746 = vrot.lane.b32.xlu0 %v355, 64
        %v747 = vpop.permute.xlu0 %746
        %v749 = vsel %vm358, %v600, 0
        %v752 = vsel %vm606, %v747, 0
        %754 = vmatprep.subr.bf16.mxu0 0
        %755 = vmatpush1.bf16.msra.mxu0 %v752
        %756 = vmatprep.subr.bf16.mxu0 0
        %757 = vmatpush1.bf16.msra.mxu0 0
        %758 = vmatprep.subr.bf16.mxu0 0
        %759 = vmatpush1.bf16.msra.mxu0 0
        %760 = vmatprep.subr.bf16.mxu0 0
        %761 = vmatpush1.bf16.msra.mxu0 0
        %762 = vmatprep.subr.bf16.mxu0 0
        %763 = vmatpush1.bf16.msra.mxu0 0
        %764 = vmatprep.subr.bf16.mxu0 0
        %765 = vmatpush1.bf16.msra.mxu0 0
        %766 = vmatprep.subr.bf16.mxu0 0
        %767 = vmatpush1.bf16.msra.mxu0 0
        %768 = vmatprep.subr.bf16.mxu0 0
        %769 = vmatpush1.bf16.msra.mxu0 0
        %770 = vmatprep.subr.bf16.mxu0 0
        %771 = vmatpush1.bf16.msra.mxu0 0
        %772 = vmatprep.subr.bf16.mxu0 0
        %773 = vmatpush1.bf16.msra.mxu0 0
        %774 = vmatprep.subr.bf16.mxu0 0
        %775 = vmatpush1.bf16.msra.mxu0 0
        %776 = vmatprep.subr.bf16.mxu0 0
        %777 = vmatpush1.bf16.msra.mxu0 0
        %778 = vmatprep.subr.bf16.mxu0 0
        %779 = vmatpush1.bf16.msra.mxu0 0
        %780 = vmatprep.subr.bf16.mxu0 0
        %781 = vmatpush1.bf16.msra.mxu0 0
        %782 = vmatprep.subr.bf16.mxu0 0
        %783 = vmatpush1.bf16.msra.mxu0 0
        %784 = vmatprep.subr.bf16.mxu0 0
        %785 = vmatpush1.bf16.msra.mxu0 0
        %786 = vmatprep.mubr.bf16.mxu0 0
        %787 = vmatmul.mubr.bf16.gmra.mrb[0].mxu0 %v749
        %v788 = vpop.f32.mrb[0].mxu0
        %v789 = vadd.f32 0.0, %v788
        %v790 = vpop.f32.mrb[0].mxu0
        %v791 = vpop.f32.mrb[0].mxu0
        %v792 = vpop.f32.mrb[0].mxu0
        %793 = vdwg.mxu0
        %795 = vrot.lane.b32.xlu0 %v693, 8
        %v796 = vpop.permute.xlu0 %795
        %799 = vrot.lane.b32.xlu0 %v741, 16
        %v800 = vpop.permute.xlu0 %799
        %803 = vrot.lane.b32.xlu0 %v789, 24
        %v804 = vpop.permute.xlu0 %803
        %v806 = vsel %vm358, %v645, %v796
        %vm807 = vcmask 130048
        %v808 = vsel %vm807, %v806, %v800
        %vm809 = vcmask 195584
        %v810 = vsel %vm809, %v808, %v804
        %v811 = vpack.c.bf16 %v810, %v810
        %v812 = vld [vmem:[#allocation7] sm:$0xf]
        %v813 = vld [vmem:[#allocation7 + $0x4] sm:$0xf]
        %v814 = vld [vmem:[#allocation7 + $0x8] sm:$0xf]
        %v815 = vld [vmem:[#allocation7 + $0xc] sm:$0xf]
        %v816 = vld [vmem:[%s4] sm:$0x1]
        %v818 = vlaneseq
        %v819 = vshrl.u32 %v818, 7
        %v820 = vsub.s32 0, %v819
        %v821 = vrot.slane %v816, %v820
        %v827 = vunpack.c.l.b16 %v812
        %v828 = vunpack.c.l.b16 %v813
        %v829 = vunpack.c.l.b16 %v814
        %v830 = vunpack.c.l.b16 %v815
        %v831 = vpack.c.b16 %v828, %v827
        %v832 = vpack.c.b16 %v830, %v829
        %v836 = vsel %vm295, %v811, 0
        %838 = vmatprep.subr.bf16.mxu0 0
        %839 = vmatpush1.bf16.msra.mxu0 %v831
        %840 = vmatprep.subr.bf16.mxu0 0
        %841 = vmatpush1.bf16.msra.mxu0 %v832
        %842 = vmatprep.subr.bf16.mxu0 0
        %843 = vmatpush1.bf16.msra.mxu0 0
        %844 = vmatprep.subr.bf16.mxu0 0
        %845 = vmatpush1.bf16.msra.mxu0 0
        %846 = vmatprep.subr.bf16.mxu0 0
        %847 = vmatpush1.bf16.msra.mxu0 0
        %848 = vmatprep.subr.bf16.mxu0 0
        %849 = vmatpush1.bf16.msra.mxu0 0
        %850 = vmatprep.subr.bf16.mxu0 0
        %851 = vmatpush1.bf16.msra.mxu0 0
        %852 = vmatprep.subr.bf16.mxu0 0
        %853 = vmatpush1.bf16.msra.mxu0 0
        %854 = vmatprep.subr.bf16.mxu0 0
        %855 = vmatpush1.bf16.msra.mxu0 0
        %856 = vmatprep.subr.bf16.mxu0 0
        %857 = vmatpush1.bf16.msra.mxu0 0
        %858 = vmatprep.subr.bf16.mxu0 0
        %859 = vmatpush1.bf16.msra.mxu0 0
        %860 = vmatprep.subr.bf16.mxu0 0
        %861 = vmatpush1.bf16.msra.mxu0 0
        %862 = vmatprep.subr.bf16.mxu0 0
        %863 = vmatpush1.bf16.msra.mxu0 0
        %864 = vmatprep.subr.bf16.mxu0 0
        %865 = vmatpush1.bf16.msra.mxu0 0
        %866 = vmatprep.subr.bf16.mxu0 0
        %867 = vmatpush1.bf16.msra.mxu0 0
        %868 = vmatprep.subr.bf16.mxu0 0
        %869 = vmatpush1.bf16.msra.mxu0 0
        %870 = vmatprep.mubr.bf16.mxu0 0
        %871 = vmatmul.mubr.bf16.gmra.mrb[0].mxu0 %v836
        %v872 = vpop.f32.mrb[0].mxu0
        %v873 = vadd.f32 %v821, %v872
        %v874 = vpop.f32.mrb[0].mxu0
        %v875 = vpop.f32.mrb[0].mxu0
        %v876 = vpop.f32.mrb[0].mxu0
        %877 = vdwg.mxu0
        %878 = vst.msk [vmem:[%s268] sm:$0xff] %vm295, %v873
        %s879 = sand.u32 %s141, 1
        %s880 = scalar_lea.sflag [#allocation4], %s879
        %s881 = sand.u32 %s141, 1
        %s882 = smul.addr %s881, 8
        %s883 = scalar_lea.vmem [#allocation8], %s882
        // Predicated region
        $region53: #{tpu_custom_call.1} parent=39 // pred_check
          %p884 = pneg %p151
        $region54: #{tpu_custom_call.1} parent=39 // pred_check_branch
          %886 = sbr.rel (%p884) target = $region56
        $region55: #{tpu_custom_call.1} parent=39 // pred_region
          %s888 = ssub.s32 128, 128
          %889 = vsyncadd %s880, %s888
          %s890 = smul.addr %s23, 128
          %s891 = scalar_lea.hbm %s5, %s890
          %s893 = sshll.u32 %s883, 4
          %s894 = int_to_ptr.vmem [resolvable:$true] %s893
          %896 = dma.vmem_to_hbm [thread:$0]  %s894, 128, %s891, %s880
        $region56: #{tpu_custom_call.1} parent=39 // pred_fallthru
          _
      $region40: #{tpu_custom_call.1} parent=5 // pred_fallthru
        _
      %p897 = scmp.le.s32.totalorder 2, %s18
      // Predicated region
      $region57: #{tpu_custom_call.1} parent=5 // pred_check
        %p898 = pneg %p897
      $region58: #{tpu_custom_call.1} parent=5 // pred_check_branch
        %900 = sbr.rel (%p898) target = $region60
      $region59: #{tpu_custom_call.1} parent=5 // pred_region
        %s901 = ssub.s32 %s18, 2
        // Predicated region
        $region61: #{tpu_custom_call.1} parent=59 // pred_check
          %p902 = pneg %p157
        $region62: #{tpu_custom_call.1} parent=59 // pred_check_branch
          %904 = sbr.rel (%p902) target = $region64
        $region63: #{tpu_custom_call.1} parent=59 // pred_region
          %s905 = sand.u32 %s142, 1
          %s906 = scalar_lea.sflag [#allocation4], %s905
          %s907 = sand.u32 %s142, 1
          %s908 = smul.addr %s907, 8
          %s909 = scalar_lea.vmem [#allocation8], %s908
          %910 = dma.done %s906, 128
        $region64: #{tpu_custom_call.1} parent=59 // pred_fallthru
          _
      $region60: #{tpu_custom_call.1} parent=5 // pred_fallthru
        _
    $region6: #{tpu_custom_call.1} parent=1 // loop_footer
      %s22 = sadd.s32 1, %s18
    $region7: #{tpu_custom_call.1} parent=1 // loop_footer_branch
      %17 = sbr.rel target = $region3
    $region8: #{tpu_custom_call.1} parent=1 // loop_exit
      _
    %911 = vsyncpa [#allocation3], 1
    %s912 = scalar_lea.sflag [#allocation3], 1
    %913 = vsyncpa %s912, 1
    %914 = vsyncpa [#allocation6], 1
    %915 = vsyncpa [#allocation4], 1
    %s916 = scalar_lea.sflag [#allocation4], 1
    %917 = vsyncpa %s916, 1

</llo_original>
